<compile_context>
chip_gen: v5e
topology: v5e:2x2
jax: 0.10.0
libtpu: 0.0.40
codegen_flags: <defaults>
</compile_context>

<pallas_src>
import functools

import jax
import jax.numpy as jnp
from jax.experimental import pallas as pl
from jax.experimental.pallas import tpu as pltpu

PARAM_DTYPE = jnp.bfloat16     # weights / activations (MXU-friendly)
LN_DTYPE = jnp.float32         # LN gamma/beta + statistics
LN_EPS = 1e-6


def _round_up(x, m):
    return (x + m - 1) // m * m


def _vmem_capacity_bytes():
    try:
        return int(pltpu.get_tpu_info().vmem_capacity_bytes)
    except Exception:
        return 64 << 20        # conservative default (v7x per-core VMEM)


_VMEM_CAP = _vmem_capacity_bytes()
# Scoped-VMEM limit for every pallas_call: generous on 128 MiB parts
# (v5e/v6e), conservative on 64 MiB v7x.
VMEM_LIMIT = int(min(96 << 20, max(32 << 20, (_VMEM_CAP * 3) // 4)))

TILE_M = 256
TILE_N = 256
# Bigger MLP hidden chunk on 128 MiB parts (fewer accumulator passes).
TILE_H = 1024 if _VMEM_CAP >= (96 << 20) else 512
# Attention per-step working-set budget (double buffering accounted below).
ATTN_BUDGET = (12 << 20) if _VMEM_CAP >= (96 << 20) else (6 << 20)


# -----------------------------------------------------------------------------
# Tiling helpers
# -----------------------------------------------------------------------------
def _row_tile(M, target=TILE_M, align=16):
    """Row tile and padded row count (bf16 sublane packing => align 16)."""
    if M <= target:
        tm = _round_up(M, align)
        return tm, tm
    t = (target // align) * align
    while t >= 128:                      # prefer an aligned divisor (no padding)
        if M % t == 0:
            return t, M
        t -= align
    tm = (target // align) * align       # otherwise pad M up to the tile
    return tm, _round_up(M, tm)


def _col_tile(N, target=TILE_N):
    if N <= target:
        return N
    t = (target // 128) * 128
    while t >= 128:
        if N % t == 0:
            return t
        t -= 128
    # TODO(synk): wide non-128-divisible N would need column padding.
    return N


def _pad_rows(x, mp):
    m = x.shape[0]
    if m == mp:
        return x
    return jnp.pad(x, ((0, mp - m), (0, 0)))


def _mm_cost(M, K, N, trans=0):
    b = (M * K + K * N + M * N) * jnp.dtype(PARAM_DTYPE).itemsize
    return pl.CostEstimate(flops=2 * M * K * N, transcendentals=trans,
                           bytes_accessed=b)


def _head_group(H, d, T, budget=ATTN_BUDGET):
    """Largest divisor of H with (hb*d) % 128 == 0 fitting the VMEM budget.

    Budget model: double-buffered q/k/v/o bf16 blocks + per-head f32 score and
    bf16 probability intermediates."""
    per_head = 2 * 4 * T * d * 2 + T * T * 6
    aligned = [h for h in range(1, H + 1) if H % h == 0 and (h * d) % 128 == 0]
    if not aligned:
        # TODO(synk): embed dims that are not multiples of 128 need a padded-D path.
        aligned = [H]
    fit = max(1, budget // max(per_head, 1))
    cands = [h for h in aligned if h <= fit]
    return max(cands) if cands else min(aligned)


# -----------------------------------------------------------------------------
# Pallas kernels
# -----------------------------------------------------------------------------
def _patch_embed_kernel(xp_ref, w_ref, b_ref, add_ref, o_ref, *, P):
    """Patch matmul + cls token + pos-embed + T-padding, one batch element.

    add_ref: (T_pad, D) f32 with row0 = cls+pos[0], rows 1..P = pos[1..P],
    padded rows = 0."""
    t_pad, D = add_ref.shape
    tok = jnp.dot(xp_ref[0], w_ref[...], preferred_element_type=jnp.float32)
    tok = tok + b_ref[...].astype(jnp.float32) + add_ref[1:P + 1, :]
    o_ref[0, 0:1, :] = add_ref[0:1, :].astype(o_ref.dtype)
    o_ref[0, 1:P + 1, :] = tok.astype(o_ref.dtype)
    if t_pad > P + 1:
        o_ref[0, P + 1:, :] = jnp.zeros((t_pad - P - 1, D), o_ref.dtype)


def _ln_linear_kernel(x_ref, g_ref, bl_ref, w_ref, b_ref, o_ref, xn_ref):
    """Fused LayerNorm(x) @ W + b.  LN computed once per row tile (j == 0) into
    a VMEM scratch and reused for every N tile (inner 'arbitrary' axis)."""
    @pl.when(pl.program_id(1) == 0)
    def _():
        x = x_ref[...].astype(jnp.float32)
        mu = jnp.mean(x, axis=-1, keepdims=True)
        var = jnp.mean(jnp.square(x - mu), axis=-1, keepdims=True)
        xn = (x - mu) * jax.lax.rsqrt(var + LN_EPS)
        xn_ref[...] = (xn * g_ref[...] + bl_ref[...]).astype(xn_ref.dtype)

    acc = jnp.dot(xn_ref[...], w_ref[...], preferred_element_type=jnp.float32)
    o_ref[...] = (acc + b_ref[...].astype(jnp.float32)).astype(o_ref.dtype)


def _linear_res_kernel(x_ref, w_ref, b_ref, r_ref, o_ref):
    """x @ W + b + residual (residual add fused into the matmul epilogue)."""
    acc = jnp.dot(x_ref[...], w_ref[...], preferred_element_type=jnp.float32)
    acc = acc + b_ref[...].astype(jnp.float32) + r_ref[...].astype(jnp.float32)
    o_ref[...] = acc.astype(o_ref.dtype)


def _mlp_kernel(x_ref, g_ref, bl_ref, w1_ref, b1_ref, w2_ref, b2_ref, o_ref,
                xn_ref, acc_ref):
    """Fused LN -> fc1 -> GELU -> fc2 -> +residual; hidden dim chunked on grid
    axis 1, the 4*D intermediate never leaves VMEM."""
    h = pl.program_id(1)

    @pl.when(h == 0)
    def _():
        x = x_ref[...].astype(jnp.float32)
        mu = jnp.mean(x, axis=-1, keepdims=True)
        var = jnp.mean(jnp.square(x - mu), axis=-1, keepdims=True)
        xn = (x - mu) * jax.lax.rsqrt(var + LN_EPS)
        xn_ref[...] = (xn * g_ref[...] + bl_ref[...]).astype(xn_ref.dtype)
        acc_ref[...] = jnp.zeros_like(acc_ref)

    # TODO(synk): PyTorch nn.GELU() is the exact erf form; tanh-approx GELU
    # is used for robust Mosaic lowering (EUP tanh).
    t = jnp.dot(xn_ref[...], w1_ref[...], preferred_element_type=jnp.float32)
    t = jax.nn.gelu(t + b1_ref[...].astype(jnp.float32), approximate=True)
    acc_ref[...] += jnp.dot(t.astype(w2_ref.dtype), w2_ref[...],
                            preferred_element_type=jnp.float32)

    @pl.when(h == pl.num_programs(1) - 1)
    def _():
        o_ref[...] = (acc_ref[...] + b2_ref[...].astype(jnp.float32)
                      + x_ref[...].astype(jnp.float32)).astype(o_ref.dtype)


def _attention_kernel(q_ref, k_ref, v_ref, o_ref, *, scale, hb, d, t_valid):
    """softmax(q k^T / sqrt(d)) v for one (batch, head-group).

    q/k/v refs are (1, T_pad, hb*d) column slabs of the LN+QKV output; padded
    key positions (>= t_valid) are masked out."""
    T = q_ref.shape[1]
    q = (q_ref[0].astype(jnp.float32) * scale).astype(q_ref.dtype)  # scale q, not s
    k = k_ref[0]
    v = v_ref[0]
    need_mask = t_valid < T
    if need_mask:
        kmask = jax.lax.broadcasted_iota(jnp.int32, (T, T), 1) < t_valid

    outs = []
    for hi in range(hb):
        sl = slice(hi * d, (hi + 1) * d)
        s = jnp.einsum("td,sd->ts", q[:, sl], k[:, sl],
                       preferred_element_type=jnp.float32)
        if need_mask:
            s = jnp.where(kmask, s, -1e30)
        s = s - jnp.max(s, axis=-1, keepdims=True)
        p = jnp.exp(s)
        p = p * pl.reciprocal(jnp.sum(p, axis=-1, keepdims=True), approx=True)
        outs.append(jnp.dot(p.astype(v.dtype), v[:, sl],
                            preferred_element_type=jnp.float32))
    o = outs[0] if hb == 1 else jnp.concatenate(outs, axis=-1)
    o_ref[0] = o.astype(o_ref.dtype)
    # TODO(synk): add a flash-style KV-tiled inner loop for long sequences so
    # the hb*T*T score block stays VMEM-flat (v7x 64 MiB).


def _head_kernel(x_ref, g_ref, bl_ref, w_ref, o_ref, *, logit_scale):
    """Fused head: LayerNorm -> Linear (no bias) -> L2 normalize * logit_scale."""
    x = x_ref[...].astype(jnp.float32)
    mu = jnp.mean(x, axis=-1, keepdims=True)
    var = jnp.mean(jnp.square(x - mu), axis=-1, keepdims=True)
    xn = (x - mu) * jax.lax.rsqrt(var + LN_EPS)
    xn = (xn * g_ref[...] + bl_ref[...]).astype(w_ref.dtype)
    y = jnp.dot(xn, w_ref[...], preferred_element_type=jnp.float32)
    inv = jax.lax.rsqrt(jnp.maximum(jnp.sum(y * y, axis=-1, keepdims=True),
                                    1e-24))
    o_ref[...] = (y * inv * logit_scale).astype(o_ref.dtype)


# -----------------------------------------------------------------------------
# Pallas wrappers
# -----------------------------------------------------------------------------
def pallas_patch_embed(xp, w, b, cls_token, pos_embed):
    """xp: (B, P, K) patchified input -> (B, T_pad, D) tokens (+ t_valid)."""
    B, P, K = xp.shape
    D = w.shape[1]
    t_valid = P + 1
    t_pad = _round_up(t_valid, 16)
    add = jnp.zeros((t_pad, D), jnp.float32)
    add = add.at[0].set(cls_token.reshape(D).astype(jnp.float32)
                        + pos_embed[0, 0].astype(jnp.float32))
    add = add.at[1:t_valid].set(pos_embed[0, 1:].astype(jnp.float32))
    kernel = functools.partial(_patch_embed_kernel, P=P)
    out = pl.pallas_call(
        kernel,
        out_shape=jax.ShapeDtypeStruct((B, t_pad, D), PARAM_DTYPE),
        grid=(B,),
        in_specs=[
            pl.BlockSpec((1, P, K), lambda bb: (bb, 0, 0)),
            pl.BlockSpec((K, D), lambda bb: (0, 0)),
            pl.BlockSpec((1, D), lambda bb: (0, 0)),
            pl.BlockSpec((t_pad, D), lambda bb: (0, 0)),
        ],
        out_specs=pl.BlockSpec((1, t_pad, D), lambda bb: (bb, 0, 0)),
        compiler_params=pltpu.CompilerParams(
            dimension_semantics=("parallel",), vmem_limit_bytes=VMEM_LIMIT),
        cost_estimate=_mm_cost(B * P, K, D),
    )(xp, w, b.reshape(1, D).astype(w.dtype), add)
    return out, t_valid


def pallas_ln_linear(x, gamma, beta, w, b=None):
    """Fused LayerNorm + Linear; LN amortized across N tiles via VMEM scratch."""
    M, K = x.shape
    Kw, N = w.shape
    assert K == Kw
    if b is None:
        b = jnp.zeros((N,), w.dtype)
    tm, Mp = _row_tile(M)
    tn = _col_tile(N)
    xp = _pad_rows(x, Mp)
    out = pl.pallas_call(
        _ln_linear_kernel,
        out_shape=jax.ShapeDtypeStruct((Mp, N), x.dtype),
        grid=(Mp // tm, N // tn),
        in_specs=[
            pl.BlockSpec((tm, K), lambda i, j: (i, 0)),
            pl.BlockSpec((1, K), lambda i, j: (0, 0)),
            pl.BlockSpec((1, K), lambda i, j: (0, 0)),
            pl.BlockSpec((K, tn), lambda i, j: (0, j)),
            pl.BlockSpec((1, tn), lambda i, j: (0, j)),
        ],
        out_specs=pl.BlockSpec((tm, tn), lambda i, j: (i, j)),
        scratch_shapes=[pltpu.VMEM((tm, K), PARAM_DTYPE)],
        compiler_params=pltpu.CompilerParams(
            dimension_semantics=("parallel", "arbitrary"),
            vmem_limit_bytes=VMEM_LIMIT),
        cost_estimate=_mm_cost(Mp, K, N),
    )(xp, gamma.reshape(1, K).astype(LN_DTYPE),
      beta.reshape(1, K).astype(LN_DTYPE), w, b.reshape(1, N).astype(w.dtype))
    return out if Mp == M else out[:M]


def pallas_linear_residual(x, w, b, res):
    M, K = x.shape
    _, N = w.shape
    tm, Mp = _row_tile(M)
    tn = _col_tile(N)
    xp = _pad_rows(x, Mp)
    rp = _pad_rows(res, Mp)
    out = pl.pallas_call(
        _linear_res_kernel,
        out_shape=jax.ShapeDtypeStruct((Mp, N), x.dtype),
        grid=(Mp // tm, N // tn),
        in_specs=[
            pl.BlockSpec((tm, K), lambda i, j: (i, 0)),
            pl.BlockSpec((K, tn), lambda i, j: (0, j)),
            pl.BlockSpec((1, tn), lambda i, j: (0, j)),
            pl.BlockSpec((tm, tn), lambda i, j: (i, j)),
        ],
        out_specs=pl.BlockSpec((tm, tn), lambda i, j: (i, j)),
        compiler_params=pltpu.CompilerParams(
            dimension_semantics=("parallel", "parallel"),
            vmem_limit_bytes=VMEM_LIMIT),
        cost_estimate=_mm_cost(Mp, K, N),
    )(xp, w, b.reshape(1, N).astype(w.dtype), rp)
    return out if Mp == M else out[:M]


def pallas_mlp(x, gamma, beta, w1, b1, w2, b2):
    """LN -> fc1 -> GELU -> fc2 -> +residual, hidden dim chunked on the grid."""
    M, D = x.shape
    _, H = w1.shape
    tm, Mp = _row_tile(M)
    th = _col_tile(H, TILE_H)
    xp = _pad_rows(x, Mp)
    out = pl.pallas_call(
        _mlp_kernel,
        out_shape=jax.ShapeDtypeStruct((Mp, D), x.dtype),
        grid=(Mp // tm, H // th),
        in_specs=[
            pl.BlockSpec((tm, D), lambda i, h: (i, 0)),
            pl.BlockSpec((1, D), lambda i, h: (0, 0)),
            pl.BlockSpec((1, D), lambda i, h: (0, 0)),
            pl.BlockSpec((D, th), lambda i, h: (0, h)),
            pl.BlockSpec((1, th), lambda i, h: (0, h)),
            pl.BlockSpec((th, D), lambda i, h: (h, 0)),
            pl.BlockSpec((1, D), lambda i, h: (0, 0)),
        ],
        out_specs=pl.BlockSpec((tm, D), lambda i, h: (i, 0)),
        scratch_shapes=[pltpu.VMEM((tm, D), PARAM_DTYPE),
                        pltpu.VMEM((tm, D), jnp.float32)],
        compiler_params=pltpu.CompilerParams(
            dimension_semantics=("parallel", "arbitrary"),
            vmem_limit_bytes=VMEM_LIMIT),
        cost_estimate=_mm_cost(Mp, D, 2 * H, trans=Mp * H),
    )(xp, gamma.reshape(1, D).astype(LN_DTYPE),
      beta.reshape(1, D).astype(LN_DTYPE),
      w1, b1.reshape(1, H).astype(w1.dtype),
      w2, b2.reshape(1, D).astype(w2.dtype))
    return out if Mp == M else out[:M]


def pallas_attention(qkv, num_heads, t_valid):
    """qkv: (B, T_pad, 3D) fused LN+QKV output -> (B, T_pad, D) attention out.

    Q/K/V are read straight out of the 3D column axis (block width hb*d) —
    no XLA transposes — and the output is written lane-dense as (B, T, D)."""
    B, T, threeD = qkv.shape
    D = threeD // 3
    d = D // num_heads
    hb = _head_group(num_heads, d, T)
    nhb = num_heads // hb
    scale = 1.0 / float(d) ** 0.5
    kernel = functools.partial(_attention_kernel, scale=scale, hb=hb, d=d,
                               t_valid=t_valid)
    blk = (1, T, hb * d)

    def q_map(bb, h):
        return (bb, 0, h)

    def k_map(bb, h, _n=nhb):
        return (bb, 0, _n + h)

    def v_map(bb, h, _n=nhb):
        return (bb, 0, 2 * _n + h)

    cost = pl.CostEstimate(
        flops=4 * B * num_heads * T * T * d,
        transcendentals=B * num_heads * T * T,
        bytes_accessed=4 * B * T * D * jnp.dtype(PARAM_DTYPE).itemsize)
    return pl.pallas_call(
        kernel,
        out_shape=jax.ShapeDtypeStruct((B, T, D), qkv.dtype),
        grid=(B, nhb),
        in_specs=[pl.BlockSpec(blk, q_map),
                  pl.BlockSpec(blk, k_map),
                  pl.BlockSpec(blk, v_map)],
        out_specs=pl.BlockSpec(blk, lambda bb, h: (bb, 0, h)),
        compiler_params=pltpu.CompilerParams(
            dimension_semantics=("parallel", "parallel"),
            vmem_limit_bytes=VMEM_LIMIT),
        cost_estimate=cost,
    )(qkv, qkv, qkv)


def pallas_head(cls, gamma, beta, w, logit_scale):
    """Fused head + postprocessor: LN -> Linear -> L2 normalize * logit_scale."""
    M, D = cls.shape
    N = w.shape[1]
    tm, Mp = _row_tile(M)
    xp = _pad_rows(cls, Mp)
    # TODO(synk): logit_scale is baked in as a static float; a traced/learned
    # scale should be passed as an SMEM scalar to avoid recompiles.
    kernel = functools.partial(_head_kernel, logit_scale=float(logit_scale))
    out = pl.pallas_call(
        kernel,
        out_shape=jax.ShapeDtypeStruct((Mp, N), jnp.float32),
        grid=(Mp // tm,),
        in_specs=[
            pl.BlockSpec((tm, D), lambda i: (i, 0)),
            pl.BlockSpec((1, D), lambda i: (0, 0)),
            pl.BlockSpec((1, D), lambda i: (0, 0)),
            pl.BlockSpec((D, N), lambda i: (0, 0)),
        ],
        out_specs=pl.BlockSpec((tm, N), lambda i: (i, 0)),
        compiler_params=pltpu.CompilerParams(
            dimension_semantics=("parallel",), vmem_limit_bytes=VMEM_LIMIT),
        cost_estimate=_mm_cost(Mp, D, N),
    )(xp, gamma.reshape(1, D).astype(LN_DTYPE),
      beta.reshape(1, D).astype(LN_DTYPE), w)
    return out if Mp == M else out[:M]


# -----------------------------------------------------------------------------
# Deterministic parameter initialization (synthetic, not a checkpoint load)
# -----------------------------------------------------------------------------
def _init_linear(key, k_in, k_out, std=0.02, bias=True):
    kw, _ = jax.random.split(key)
    w = (jax.random.normal(kw, (k_in, k_out)) * std).astype(PARAM_DTYPE)
    b = jnp.zeros((k_out,), PARAM_DTYPE) if bias else None
    return w, b


def _init_block(key, D, mlp_ratio=4):
    ks = jax.random.split(key, 4)
    qkv_w, qkv_b = _init_linear(ks[0], D, 3 * D)
    proj_w, proj_b = _init_linear(ks[1], D, D)
    fc1_w, fc1_b = _init_linear(ks[2], D, mlp_ratio * D)
    fc2_w, fc2_b = _init_linear(ks[3], mlp_ratio * D, D)
    return dict(
        ln1_g=jnp.ones((D,), LN_DTYPE), ln1_b=jnp.zeros((D,), LN_DTYPE),
        qkv_w=qkv_w, qkv_b=qkv_b, proj_w=proj_w, proj_b=proj_b,
        ln2_g=jnp.ones((D,), LN_DTYPE), ln2_b=jnp.zeros((D,), LN_DTYPE),
        fc1_w=fc1_w, fc1_b=fc1_b, fc2_w=fc2_w, fc2_b=fc2_b,
    )


def init_modality(key, cfg):
    P = (cfg["img"] // cfg["patch"]) ** 2
    K = cfg["in_ch"] * cfg["patch"] ** 2
    D = cfg["embed_dim"]
    ks = jax.random.split(key, 4 + cfg["blocks"])
    patch_w, patch_b = _init_linear(ks[0], K, D)
    cls_token = (jax.random.normal(ks[1], (1, 1, D)) * 0.02).astype(PARAM_DTYPE)
    pos_embed = (jax.random.normal(ks[2], (1, P + 1, D)) * 0.02).astype(PARAM_DTYPE)
    head_w, _ = _init_linear(ks[3], D, cfg["out_dim"], bias=False)
    blocks = [_init_block(ks[4 + i], D) for i in range(cfg["blocks"])]
    return dict(
        patch_w=patch_w, patch_b=patch_b,
        cls_token=cls_token, pos_embed=pos_embed,
        head_ln_g=jnp.ones((D,), LN_DTYPE), head_ln_b=jnp.zeros((D,), LN_DTYPE),
        head_w=head_w, blocks=blocks,
    )


# -----------------------------------------------------------------------------
# ImageBind modality pipeline: preprocessor -> trunk -> head -> postprocessor
# -----------------------------------------------------------------------------
def preprocess(p, cfg, x):
    """Patch-embed conv (kernel==stride) + cls token + pos embed + T padding."""
    x = x.astype(PARAM_DTYPE)
    B, C, H, W = x.shape  # NCHW
    ph = cfg["patch"]
    # TODO(synk): fold this NCHW patchify gather into the patch-embed kernel's
    # BlockSpec index_map (or accept NHWC) to save one HBM pass over the input.
    xp = x.reshape(B, C, H // ph, ph, W // ph, ph)
    xp = xp.transpose(0, 2, 4, 1, 3, 5).reshape(B, (H // ph) * (W // ph),
                                                C * ph * ph)
    tok, t_valid = pallas_patch_embed(xp, p["patch_w"], p["patch_b"],
                                      p["cls_token"], p["pos_embed"])
    return {"trunk": {"tokens": tok, "t_valid": t_valid}, "head": {}}


def transformer_block(bp, x, num_heads, t_valid):
    B, T, D = x.shape
    xf = x.reshape(B * T, D)
    # attention: fused LN+QKV, transpose-free head attention, fused proj+res
    qkv = pallas_ln_linear(xf, bp["ln1_g"], bp["ln1_b"], bp["qkv_w"], bp["qkv_b"])
    o = pallas_attention(qkv.reshape(B, T, 3 * D), num_heads, t_valid)
    x1 = pallas_linear_residual(o.reshape(B * T, D), bp["proj_w"], bp["proj_b"], xf)
    # fused LN -> fc1 -> GELU -> fc2 -> +residual
    x2 = pallas_mlp(x1, bp["ln2_g"], bp["ln2_b"],
                    bp["fc1_w"], bp["fc1_b"], bp["fc2_w"], bp["fc2_b"])
    return x2.reshape(B, T, D)


def trunk(p, cfg, tokens, t_valid):
    x = tokens
    for bp in p["blocks"]:
        x = transformer_block(bp, x, cfg["heads"], t_valid)
    return x


def head_and_postprocess(p, cfg, x, **head_inputs):
    """LayerNorm -> cls select -> Linear -> F.normalize * logit_scale.

    LayerNorm is per-token, so selecting the cls row first is equivalent and
    avoids normalizing tokens that are discarded anyway."""
    cls = x[:, 0]  # cls token sits at row 0 (padded rows live at the tail)
    return pallas_head(cls, p["head_ln_g"], p["head_ln_b"], p["head_w"],
                       cfg["logit_scale"])


def imagebind_forward(params, cfgs, inputs):
    """Mirrors ImageBindModel.forward over a dict of modality inputs."""
    outputs = {}
    for modality_key, modality_value in inputs.items():
        p, cfg = params[modality_key], cfgs[modality_key]
        reduce_list = modality_value.ndim >= 5
        if reduce_list:
            B, S = modality_value.shape[:2]
            modality_value = modality_value.reshape(B * S, *modality_value.shape[2:])
        pre = preprocess(p, cfg, modality_value)
        x = trunk(p, cfg, **pre["trunk"])
        x = head_and_postprocess(p, cfg, x, **pre["head"])
        if reduce_list:
            x = x.reshape(B, S, -1).mean(axis=1)
        outputs[modality_key] = x
    return outputs


# -----------------------------------------------------------------------------
if __name__ == "__main__":
    key = jax.random.PRNGKey(0)
    kparam, kvision, kaudio = jax.random.split(key, 3)

    cfgs = {
        "vision": dict(in_ch=3, patch=4, img=16, embed_dim=128, heads=4,
                       blocks=2, out_dim=128, logit_scale=1.0),
        "audio": dict(in_ch=1, patch=4, img=16, embed_dim=128, heads=4,
                      blocks=2, out_dim=128, logit_scale=20.0),
    }
    params = {
        "vision": init_modality(jax.random.fold_in(kparam, 0), cfgs["vision"]),
        "audio": init_modality(jax.random.fold_in(kparam, 1), cfgs["audio"]),
    }
    inputs = {
        # vision: (B, C, H, W) NCHW
        "vision": jax.random.normal(kvision, (2, 3, 16, 16), jnp.float32),
        # audio clips: (B, S, C, H, W) -> ndim >= 5 triggers the mean-over-S path
        "audio": jax.random.normal(kaudio, (2, 2, 1, 16, 16), jnp.float32),
    }

    outputs = imagebind_forward(params, cfgs, inputs)
    for v in outputs.values():
        jax.block_until_ready(v)

    assert outputs["vision"].shape == (2, cfgs["vision"]["out_dim"])
    assert outputs["audio"].shape == (2, cfgs["audio"]["out_dim"])
    assert bool(jnp.all(jnp.isfinite(outputs["vision"])))
    assert bool(jnp.all(jnp.isfinite(outputs["audio"])))
    print("KERNEL_OK")
</pallas_src>

<mosaic_0001>
module attributes {stable_mosaic.version = 11 : i64} {
  func.func @_patch_embed_kernel(%arg0: i32, %arg1: memref<1x16x48xbf16, #tpu.memory_space<vmem>>, %arg2: memref<48x128xbf16, #tpu.memory_space<vmem>>, %arg3: memref<1x128xbf16, #tpu.memory_space<vmem>>, %arg4: memref<32x128xf32, #tpu.memory_space<vmem>>, %arg5: memref<1x32x128xbf16, #tpu.memory_space<vmem>>) attributes {dimension_semantics = [#tpu.dimension_semantics<parallel>], iteration_bounds = array<i64: 2>, scalar_prefetch = 0 : i64, scratch_operands = 0 : i64, tpu.core_type = #tpu.core_type<tc>, window_params = [{transform_indices = @transform_0, window_bounds = array<i64: 1, 16, 48>}, {pipeline_mode = #tpu.pipeline_mode<synchronous>, transform_indices = @transform_1, window_bounds = array<i64: 48, 128>}, {pipeline_mode = #tpu.pipeline_mode<synchronous>, transform_indices = @transform_2, window_bounds = array<i64: 1, 128>}, {pipeline_mode = #tpu.pipeline_mode<synchronous>, transform_indices = @transform_3, window_bounds = array<i64: 32, 128>}, {transform_indices = @transform_4, window_bounds = array<i64: 1, 32, 128>}]} {
    %c0 = arith.constant 0 : index
    %c0_0 = arith.constant 0 : index
    %c0_1 = arith.constant 0 : index
    %0 = vector.load %arg1[%c0, %c0_0, %c0_1] : memref<1x16x48xbf16, #tpu.memory_space<vmem>>, vector<1x16x48xbf16>
    %1 = vector.shape_cast %0 : vector<1x16x48xbf16> to vector<16x48xbf16>
    %c0_2 = arith.constant 0 : index
    %c0_3 = arith.constant 0 : index
    %2 = vector.load %arg2[%c0_2, %c0_3] : memref<48x128xbf16, #tpu.memory_space<vmem>>, vector<48x128xbf16>
    %cst = arith.constant dense<0.000000e+00> : vector<16x128xf32>
    %3 = tpu.matmul %1, %2, %cst {dimension_numbers = #tpu.dot_dimension_numbers<[1], [0], [0], [1], [0, 0, 1, 1], [], []>} : vector<16x48xbf16>, vector<48x128xbf16>, vector<16x128xf32> -> vector<16x128xf32>
    %c0_4 = arith.constant 0 : index
    %c0_5 = arith.constant 0 : index
    %4 = vector.load %arg3[%c0_4, %c0_5] : memref<1x128xbf16, #tpu.memory_space<vmem>>, vector<1x128xbf16>
    %5 = arith.extf %4 : vector<1x128xbf16> to vector<1x128xf32>
    %6 = vector.broadcast %5 : vector<1x128xf32> to vector<16x128xf32>
    %7 = arith.addf %3, %6 : vector<16x128xf32>
    %c1 = arith.constant 1 : index
    %c0_6 = arith.constant 0 : index
    %8 = vector.load %arg4[%c1, %c0_6] : memref<32x128xf32, #tpu.memory_space<vmem>>, vector<16x128xf32>
    %9 = arith.addf %7, %8 : vector<16x128xf32>
    %c0_7 = arith.constant 0 : index
    %c0_8 = arith.constant 0 : index
    %10 = vector.load %arg4[%c0_7, %c0_8] : memref<32x128xf32, #tpu.memory_space<vmem>>, vector<1x128xf32>
    %11 = arith.truncf %10 : vector<1x128xf32> to vector<1x128xbf16>
    %c0_9 = arith.constant 0 : index
    %c0_10 = arith.constant 0 : index
    %c0_11 = arith.constant 0 : index
    %12 = vector.load %arg5[%c0_9, %c0_10, %c0_11] : memref<1x32x128xbf16, #tpu.memory_space<vmem>>, vector<1x1x128xbf16>
    %13 = vector.shape_cast %12 : vector<1x1x128xbf16> to vector<1x128xbf16>
    %14 = vector.shape_cast %11 : vector<1x128xbf16> to vector<1x1x128xbf16>
    tpu.vector_store %arg5[%c0_9, %c0_10, %c0_11], %14 {strides = array<i32>} : memref<1x32x128xbf16, #tpu.memory_space<vmem>>, vector<1x1x128xbf16>,
    %15 = arith.truncf %9 : vector<16x128xf32> to vector<16x128xbf16>
    %c0_12 = arith.constant 0 : index
    %c1_13 = arith.constant 1 : index
    %c0_14 = arith.constant 0 : index
    %16 = vector.load %arg5[%c0_12, %c1_13, %c0_14] : memref<1x32x128xbf16, #tpu.memory_space<vmem>>, vector<1x16x128xbf16>
    %17 = vector.shape_cast %16 : vector<1x16x128xbf16> to vector<16x128xbf16>
    %18 = vector.shape_cast %15 : vector<16x128xbf16> to vector<1x16x128xbf16>
    tpu.vector_store %arg5[%c0_12, %c1_13, %c0_14], %18 {strides = array<i32>} : memref<1x32x128xbf16, #tpu.memory_space<vmem>>, vector<1x16x128xbf16>,
    %cst_15 = arith.constant 0.000000e+00 : bf16
    %19 = vector.broadcast %cst_15 : bf16 to vector<15x128xbf16>
    %c0_16 = arith.constant 0 : index
    %c17 = arith.constant 17 : index
    %c0_17 = arith.constant 0 : index
    %20 = vector.load %arg5[%c0_16, %c17, %c0_17] : memref<1x32x128xbf16, #tpu.memory_space<vmem>>, vector<1x15x128xbf16>
    %21 = vector.shape_cast %20 : vector<1x15x128xbf16> to vector<15x128xbf16>
    %22 = vector.shape_cast %19 : vector<15x128xbf16> to vector<1x15x128xbf16>
    tpu.vector_store %arg5[%c0_16, %c17, %c0_17], %22 {strides = array<i32>} : memref<1x32x128xbf16, #tpu.memory_space<vmem>>, vector<1x15x128xbf16>,
    return
  }
  func.func @transform_0(%arg0: i32) -> (i32, i32, i32) {
    %c0_i32 = arith.constant 0 : i32
    %c0_i32_0 = arith.constant 0 : i32
    %c0_i32_1 = arith.constant 0 : i32
    return %arg0, %c0_i32, %c0_i32_0 : i32, i32, i32
  }
  func.func @transform_1(%arg0: i32) -> (i32, i32) {
    %c0_i32 = arith.constant 0 : i32
    %c0_i32_0 = arith.constant 0 : i32
    %c0_i32_1 = arith.constant 0 : i32
    return %c0_i32, %c0_i32_0 : i32, i32
  }
  func.func @transform_2(%arg0: i32) -> (i32, i32) {
    %c0_i32 = arith.constant 0 : i32
    %c0_i32_0 = arith.constant 0 : i32
    %c0_i32_1 = arith.constant 0 : i32
    return %c0_i32, %c0_i32_0 : i32, i32
  }
  func.func @transform_3(%arg0: i32) -> (i32, i32) {
    %c0_i32 = arith.constant 0 : i32
    %c0_i32_0 = arith.constant 0 : i32
    %c0_i32_1 = arith.constant 0 : i32
    return %c0_i32, %c0_i32_0 : i32, i32
  }
  func.func @transform_4(%arg0: i32) -> (i32, i32, i32) {
    %c0_i32 = arith.constant 0 : i32
    %c0_i32_0 = arith.constant 0 : i32
    %c0_i32_1 = arith.constant 0 : i32
    return %arg0, %c0_i32, %c0_i32_0 : i32, i32, i32
  }
}

</mosaic_0001>

<llo_original>
// kernel: tpu_custom_call.1
$region0: #{tpu_custom_call.1}
  #allocation0 [shape = 'u32[]', space=smem, size = 0x4, offset = 0x4, fixed_abs, tag = 'smem constant byte address 0x4 - core index']
  #allocation1 [shape = 'u32[72,128]{1,0:T(1,128)}', space=vmem, size = 0x9000, scoped, tag = 'internal scratch']
  %s0 = inlined_call_operand.hbm [shape: bf16[2,16,48], index: 0, kind: input, shape index: {}]
  %s1 = inlined_call_operand.hbm [shape: bf16[48,128], index: 1, kind: input, shape index: {}]
  %s2 = inlined_call_operand.vmem [shape: bf16[1,128], index: 2, kind: input, shape index: {}]
  %s3 = inlined_call_operand.hbm [shape: f32[32,128], index: 3, kind: input, shape index: {}]
  %s4 = inlined_call_operand.hbm [shape: bf16[2,32,128], index: 4, kind: output, shape index: {}]
  %s5 = sld [smem:[#allocation0]]
  $region61: #{tpu_custom_call.1} parent=0
    _
  %s7 = ssub.s32 1, %s5
  %s8 = scalar_select 0, %s7, %s5
  $region1: #{tpu_custom_call.1} parent=0
    #allocation2 [shape = 'u8[8192]{0}', space=vmem, size = 0x2000, scoped, tag = 'input window, operand 0']
    #allocation3 [shape = 's32[2]{0}', space=sflag, size = 0x8, scoped, tag = 'scoped memory for tpu_custom_call.1']
    #allocation4 [shape = 's32[2]{0}', space=sflag, size = 0x8, scoped, tag = 'scoped memory for tpu_custom_call.1']
    #allocation5 [shape = 'u8[12288]{0}', space=vmem, size = 0x3000, scoped, tag = 'input window, operand 1, single buffered']
    #allocation6 [shape = 's32[1]{0}', space=sflag, size = 0x4, scoped, tag = 'scoped memory for tpu_custom_call.1']
    #allocation7 [shape = 'u8[16384]{0}', space=vmem, size = 0x4000, scoped, tag = 'input window, operand 3, single buffered']
    #allocation8 [shape = 'u8[16384]{0}', space=vmem, size = 0x4000, scoped, tag = 'output window, operand 0']
    %9 = vsyncpa [#allocation3], 0
    %s10 = scalar_lea.sflag [#allocation3], 1
    %11 = vsyncpa %s10, 0
    %12 = vsyncpa [#allocation6], 0
    %13 = vsyncpa [#allocation4], 0
    %s14 = scalar_lea.sflag [#allocation4], 1
    %15 = vsyncpa %s14, 0
    loop: start=0, step=1, limit=4
    $region2: #{tpu_custom_call.1} parent=1 // loop_pre_header
      _
    $region3: #{tpu_custom_call.1} parent=1 // loop_header
      %s17 = sphi 0, %s21
      %p18 = scmp.ge.s32.totalorder %s17, 4
      %s27 = sphi 0, %s29
      %s30 = sphi 0, %s27
      %s31 = sphi 0, %s30
      %s47 = sphi 0, %s31
      %s51 = sphi 0, %s51
      %s53 = sphi 0, %s51
      %s54 = sphi 0, %s53
      %s68 = sphi 0, %s54
      %s72 = sphi 0, %s72
      %s74 = sphi 0, %s72
      %s75 = sphi 0, %s74
      %s89 = sphi 0, %s75
      %s93 = sphi 0, %s93
      %s95 = sphi 0, %s93
      %s96 = sphi 0, %s95
      %s110 = sphi 0, %s96
      %s116 = sphi 0, %s118
      %s119 = sphi 0, %s116
      %s120 = sphi 0, %s119
      %s136 = sphi 0, %s120
    $region4: #{tpu_custom_call.1} parent=1 // loop_header_branch
      %20 = sbr.rel (%p18) target = $region8
    $region5: #{tpu_custom_call.1} parent=1 // loop_body
      %s22 = ssub.s32 %s17, 1
      %s23 = ssub.s32 %s17, 2
      %s24 = sadd.s32 %s17, 1
      %s25 = ssub.s32 %s17, %s24
      %p26 = scmp.eq.s32.totalorder %s25, 0
      %s28 = sadd.s32 %s27, 1
      %s29 = scalar_select %p26, %s27, %s28
      %p32 = pneg %p26
      %p33 = scmp.eq.s32.totalorder %s17, 1
      %p34 = por %p32, %p33
      %p35 = scmp.ne.s32.totalorder %s27, %s30
      %p36 = scmp.eq.s32.totalorder %s17, 0
      %p37 = por %p35, %p36
      %p38 = scmp.ne.s32.totalorder %s27, %s30
      %p39 = scmp.eq.s32.totalorder %s22, 1
      %p40 = por %p38, %p39
      %p41 = scmp.ne.s32.totalorder %s30, %s31
      %p42 = scmp.eq.s32.totalorder %s22, 0
      %p43 = por %p41, %p42
      %p44 = scmp.ne.s32.totalorder %s30, %s31
      %p45 = scmp.eq.s32.totalorder %s23, 1
      %p46 = por %p44, %p45
      %p48 = scmp.ne.s32.totalorder %s31, %s47
      %p49 = scmp.eq.s32.totalorder %s23, 0
      %p50 = por %p48, %p49
      %s52 = sadd.s32 %s51, 1
      %p55 = scmp.eq.s32.totalorder %s17, 1
      %p56 = scmp.ne.s32.totalorder %s51, %s53
      %p57 = scmp.eq.s32.totalorder %s17, 0
      %p58 = por %p56, %p57
      %p59 = scmp.ne.s32.totalorder %s51, %s53
      %p60 = scmp.eq.s32.totalorder %s22, 1
      %p61 = por %p59, %p60
      %p62 = scmp.ne.s32.totalorder %s53, %s54
      %p63 = scmp.eq.s32.totalorder %s22, 0
      %p64 = por %p62, %p63
      %p65 = scmp.ne.s32.totalorder %s53, %s54
      %p66 = scmp.eq.s32.totalorder %s23, 1
      %p67 = por %p65, %p66
      %p69 = scmp.ne.s32.totalorder %s54, %s68
      %p70 = scmp.eq.s32.totalorder %s23, 0
      %p71 = por %p69, %p70
      %s73 = sadd.s32 %s72, 1
      %p76 = scmp.eq.s32.totalorder %s17, 1
      %p77 = scmp.ne.s32.totalorder %s72, %s74
      %p78 = scmp.eq.s32.totalorder %s17, 0
      %p79 = por %p77, %p78
      %p80 = scmp.ne.s32.totalorder %s72, %s74
      %p81 = scmp.eq.s32.totalorder %s22, 1
      %p82 = por %p80, %p81
      %p83 = scmp.ne.s32.totalorder %s74, %s75
      %p84 = scmp.eq.s32.totalorder %s22, 0
      %p85 = por %p83, %p84
      %p86 = scmp.ne.s32.totalorder %s74, %s75
      %p87 = scmp.eq.s32.totalorder %s23, 1
      %p88 = por %p86, %p87
      %p90 = scmp.ne.s32.totalorder %s75, %s89
      %p91 = scmp.eq.s32.totalorder %s23, 0
      %p92 = por %p90, %p91
      %s94 = sadd.s32 %s93, 1
      %p97 = scmp.eq.s32.totalorder %s17, 1
      %p98 = scmp.ne.s32.totalorder %s93, %s95
      %p99 = scmp.eq.s32.totalorder %s17, 0
      %p100 = por %p98, %p99
      %p101 = scmp.ne.s32.totalorder %s93, %s95
      %p102 = scmp.eq.s32.totalorder %s22, 1
      %p103 = por %p101, %p102
      %p104 = scmp.ne.s32.totalorder %s95, %s96
      %p105 = scmp.eq.s32.totalorder %s22, 0
      %p106 = por %p104, %p105
      %p107 = scmp.ne.s32.totalorder %s95, %s96
      %p108 = scmp.eq.s32.totalorder %s23, 1
      %p109 = por %p107, %p108
      %p111 = scmp.ne.s32.totalorder %s96, %s110
      %p112 = scmp.eq.s32.totalorder %s23, 0
      %p113 = por %p111, %p112
      %s114 = ssub.s32 %s17, %s24
      %p115 = scmp.eq.s32.totalorder %s114, 0
      %s117 = sadd.s32 %s116, 1
      %s118 = scalar_select %p115, %s116, %s117
      %p121 = pneg %p115
      %p122 = scmp.eq.s32.totalorder %s17, 1
      %p123 = por %p121, %p122
      %p124 = scmp.ne.s32.totalorder %s116, %s119
      %p125 = scmp.eq.s32.totalorder %s17, 0
      %p126 = por %p124, %p125
      %p127 = scmp.ne.s32.totalorder %s116, %s119
      %p128 = scmp.eq.s32.totalorder %s22, 1
      %p129 = por %p127, %p128
      %p130 = scmp.ne.s32.totalorder %s119, %s120
      %p131 = scmp.eq.s32.totalorder %s22, 0
      %p132 = por %p130, %p131
      %p133 = scmp.ne.s32.totalorder %s119, %s120
      %p134 = scmp.eq.s32.totalorder %s23, 1
      %p135 = por %p133, %p134
      %p137 = scmp.ne.s32.totalorder %s120, %s136
      %p138 = scmp.eq.s32.totalorder %s23, 0
      %p139 = por %p137, %p138
      %p140 = scmp.le.s32.totalorder 1, %s17
      %p141 = scmp.lt.s32.totalorder %s17, 3
      %p142 = pnand %p140, %p141
      %p143 = pneg %p142
      // Predicated region
      $region9: #{tpu_custom_call.1} parent=5 // pred_check
        _
      $region10: #{tpu_custom_call.1} parent=5 // pred_check_branch
        %145 = sbr.rel (%p142) target = $region12
      $region11: #{tpu_custom_call.1} parent=5 // pred_region
        %s146 = ssub.s32 %s17, 1
        // Predicated region
        $region13: #{tpu_custom_call.1} parent=11 // pred_check
          %p147 = pneg %p64
        $region14: #{tpu_custom_call.1} parent=11 // pred_check_branch
          %149 = sbr.rel (%p147) target = $region16
        $region15: #{tpu_custom_call.1} parent=11 // pred_region
          %151 = vsyncadd [#allocation6], 0
          %s152 = sshll.u32 %s1, 4
          %s153 = int_to_ptr.hbm [resolvable:$true] %s152
          %s154 = sshll.u32 [#allocation5], 4
          %s155 = int_to_ptr.vmem [resolvable:$true] %s154
          %160 = dma.hbm_to_vmem [thread:$0]  %s153, 384, %s155, [#allocation6], 64, 64, 4
        $region16: #{tpu_custom_call.1} parent=11 // pred_fallthru
          _
        // Predicated region
        $region17: #{tpu_custom_call.1} parent=11 // pred_check
          %p161 = pneg %p85
        $region18: #{tpu_custom_call.1} parent=11 // pred_check_branch
          %163 = sbr.rel (%p161) target = $region20
        $region19: #{tpu_custom_call.1} parent=11 // pred_region
          _
        $region20: #{tpu_custom_call.1} parent=11 // pred_fallthru
          _
        // Predicated region
        $region21: #{tpu_custom_call.1} parent=11 // pred_check
          %p164 = pneg %p106
        $region22: #{tpu_custom_call.1} parent=11 // pred_check_branch
          %166 = sbr.rel (%p164) target = $region24
        $region23: #{tpu_custom_call.1} parent=11 // pred_region
          %168 = vsyncadd [#allocation6], 0
          %s169 = sshll.u32 %s3, 4
          %s170 = int_to_ptr.hbm [resolvable:$true] %s169
          %s171 = sshll.u32 [#allocation7], 4
          %s172 = int_to_ptr.vmem [resolvable:$true] %s171
          %177 = dma.hbm_to_vmem [thread:$0]  %s170, 512, %s172, [#allocation6], 128, 128, 8
        $region24: #{tpu_custom_call.1} parent=11 // pred_fallthru
          _
      $region12: #{tpu_custom_call.1} parent=5 // pred_fallthru
        _
      %p178 = scmp.lt.s32.totalorder %s17, 2
      // Predicated region
      $region25: #{tpu_custom_call.1} parent=5 // pred_check
        %p179 = pneg %p178
      $region26: #{tpu_custom_call.1} parent=5 // pred_check_branch
        %181 = sbr.rel (%p179) target = $region28
      $region27: #{tpu_custom_call.1} parent=5 // pred_region
        // Predicated region
        $region29: #{tpu_custom_call.1} parent=27 // pred_check
          %p182 = pneg %p37
        $region30: #{tpu_custom_call.1} parent=27 // pred_check_branch
          %184 = sbr.rel (%p182) target = $region32
        $region31: #{tpu_custom_call.1} parent=27 // pred_region
          %s185 = sand.u32 %s27, 1
          %s186 = scalar_lea.sflag [#allocation3], %s185
          %s187 = sand.u32 %s27, 1
          %s188 = smul.addr %s187, 8
          %s189 = scalar_lea.vmem [#allocation2], %s188
          %191 = vsyncadd %s186, 0
          %s192 = smul.addr %s17, 2
          %s193 = smul.addr %s192, 4
          %s194 = scalar_lea.hbm %s0, %s193
          %s195 = sshll.u32 %s194, 4
          %s196 = int_to_ptr.hbm [resolvable:$true] %s195
          %s197 = sshll.u32 %s189, 4
          %s198 = int_to_ptr.vmem [resolvable:$true] %s197
          %203 = dma.hbm_to_vmem [thread:$0]  %s196, 128, %s198, %s186, 64, 64, 4
        $region32: #{tpu_custom_call.1} parent=27 // pred_fallthru
          _
      $region28: #{tpu_custom_call.1} parent=5 // pred_fallthru
        _
      %p204 = scmp.le.s32.totalorder 1, %s17
      %p205 = scmp.lt.s32.totalorder %s17, 3
      %p206 = pnand %p204, %p205
      %p207 = pneg %p206
      // Predicated region
      $region33: #{tpu_custom_call.1} parent=5 // pred_check
        _
      $region34: #{tpu_custom_call.1} parent=5 // pred_check_branch
        %209 = sbr.rel (%p206) target = $region36
      $region35: #{tpu_custom_call.1} parent=5 // pred_region
        %s210 = ssub.s32 %s17, 1
        %s211 = sand.u32 %s30, 1
        %s212 = scalar_lea.sflag [#allocation3], %s211
        %s213 = sand.u32 %s30, 1
        %s214 = smul.addr %s213, 8
        %s215 = scalar_lea.vmem [#allocation2], %s214
        // Predicated region
        $region37: #{tpu_custom_call.1} parent=35 // pred_check
          %p216 = pneg %p43
        $region38: #{tpu_custom_call.1} parent=35 // pred_check_branch
          %218 = sbr.rel (%p216) target = $region40
        $region39: #{tpu_custom_call.1} parent=35 // pred_region
          %220 = dma.done %s212, 128
        $region40: #{tpu_custom_call.1} parent=35 // pred_fallthru
          _
        // Predicated region
        $region41: #{tpu_custom_call.1} parent=35 // pred_check
          %p221 = pneg %p64
        $region42: #{tpu_custom_call.1} parent=35 // pred_check_branch
          %223 = sbr.rel (%p221) target = $region44
        $region43: #{tpu_custom_call.1} parent=35 // pred_region
          %225 = dma.done [#allocation6], 384
        $region44: #{tpu_custom_call.1} parent=35 // pred_fallthru
          _
        // Predicated region
        $region45: #{tpu_custom_call.1} parent=35 // pred_check
          %p226 = pneg %p106
        $region46: #{tpu_custom_call.1} parent=35 // pred_check_branch
          %228 = sbr.rel (%p226) target = $region48
        $region47: #{tpu_custom_call.1} parent=35 // pred_region
          %230 = dma.done [#allocation6], 512
        $region48: #{tpu_custom_call.1} parent=35 // pred_fallthru
          _
        %s231 = sand.u32 %s30, 1
        %s232 = scalar_lea.sflag [#allocation3], %s231
        %s233 = sand.u32 %s30, 1
        %s234 = smul.addr %s233, 8
        %s235 = scalar_lea.vmem [#allocation2], %s234
        %p236 = pneg %p43
        %p237 = pneg %p40
        %p238 = pneg %p64
        %p239 = pneg %p61
        %p240 = pneg %p85
        %p241 = pneg %p82
        %p242 = pneg %p106
        %p243 = pneg %p103
        %p244 = pneg %p132
        %p245 = pneg %p129
        %s246 = sand.u32 %s119, 1
        %s247 = scalar_lea.sflag [#allocation4], %s246
        %s248 = sand.u32 %s119, 1
        %s249 = smul.addr %s248, 16
        %s250 = scalar_lea.vmem [#allocation8], %s249
        %v252 = vld [vmem:[%s215] sm:$0xf]
        %v253 = vld [vmem:[%s215 + $0x4] sm:$0xf]
        %v254 = vld [vmem:[#allocation5] sm:$0xf]
        %v255 = vld [vmem:[#allocation5 + $0x4] sm:$0xf]
        %v256 = vld [vmem:[#allocation5 + $0x8] sm:$0xf]
        %v257 = vld [vmem:[#allocation5 + $0xc] sm:$0xf]
        %v258 = vld [vmem:[#allocation5 + $0x10] sm:$0xf]
        %v259 = vld [vmem:[#allocation5 + $0x14] sm:$0xf]
        %v260 = vld [vmem:[%s2] sm:$0x1]
        %v261 = vunpack.c.l.bf16 %v260
        %v262 = vperm.slane %v261, 0
        %v265 = vunpack.c.l.b16 %v252
        %v266 = vunpack.c.l.b16 %v253
        %v267 = vpack.c.b16 %v266, %v265
        %v274 = vunpack.c.l.b16 %v254
        %v275 = vunpack.c.l.b16 %v255
        %v276 = vunpack.c.l.b16 %v256
        %v277 = vunpack.c.l.b16 %v257
        %v278 = vunpack.c.l.b16 %v258
        %v279 = vunpack.c.l.b16 %v259
        %v280 = vpack.c.b16 %v275, %v274
        %v281 = vpack.c.b16 %v277, %v276
        %v282 = vpack.c.b16 %v279, %v278
        %vm286 = vcmask 392192
        %v288 = vsel %vm286, %v267, 0
        %290 = vmatpush.bf16.msra.mxu0 0
        %291 = vmatpush.bf16.msra.mxu0 0
        %292 = vmatpush.bf16.msra.mxu0 0
        %293 = vmatpush.bf16.msra.mxu0 0
        %294 = vmatpush.bf16.msra.mxu0 0
        %295 = vmatpush.bf16.msra.mxu0 %v282
        %296 = vmatpush.bf16.msra.mxu0 %v281
        %297 = vmatpush.bf16.msra.mxu0 %v280
        %298 = vmatmul.bf16.gmra.mxu0 %v288
        %v299 = vpop.f32.mrf.mxu0
        %v300 = vadd.f32 %v262, %v299
        %v301 = vpop.f32.mrf.mxu0
        %v302 = vadd.f32 %v262, %v301
        %303 = vdwg.mxu0
        %v304 = vld [vmem:[#allocation7 + $0x1] sm:$0xff]
        %v305 = vld [vmem:[#allocation7 + $0x9] sm:$0xff]
        %v306 = vadd.f32 %v300, %v304
        %v307 = vadd.f32 %v302, %v305
        %v308 = vld [vmem:[#allocation7] sm:$0x1]
        %v309 = vpack.c.bf16 %v308, %v308
        %vm310 = vcmask 1040384
        %vm311 = vsmask.f32 256
        %vm312 = vmand %vm310, %vm311
        %v313 = vld [vmem:[%s250] sm:$0x1]
        %v314 = vsel %vm312, %v309, %v313
        %315 = vst [vmem:[%s250] sm:$0x1] %v314
        %v316 = vpack.c.bf16 %v306, %v306
        %v317 = vpack.c.bf16 %v307, %v307
        %vm318 = vsmask.f32 4368
        %vm319 = vmor %vm311, %vm318
        %v321 = vshrl.u32 %v316, 16
        %v323 = vrot.slane %v321, 7
        %v324 = vshll.u32 %v316, 16
        %v326 = vor.u32 %v323, %v324
        %v327 = vrot.slane %v323, 4
        %v329 = vshrl.u32 %v317, 16
        %v331 = vrot.slane %v329, 7
        %v332 = vshll.u32 %v317, 16
        %v334 = vor.u32 %v331, %v332
        %v335 = vsel %vm319, %v327, %v334
        %v336 = vrot.slane %v331, 4
        %vm340 = vcmask 1043456
        %vm341 = vsmask.f32 7938
        %vm342 = vmand %vm340, %vm341
        %v343 = vld [vmem:[%s250] sm:$0xf]
        %v344 = vsel %vm342, %v326, %v343
        %345 = vst [vmem:[%s250] sm:$0xf] %v344
        %346 = vst [vmem:[%s250 + $0x4] sm:$0xf] %v335
        %v347 = vld [vmem:[%s250 + $0x8] sm:$0x1]
        %v348 = vsel %vm312, %v336, %v347
        %349 = vst [vmem:[%s250 + $0x8] sm:$0x1] %v348
        %v350 = vld [vmem:[%s250 + $0x8] sm:$0xf]
        %v351 = vsel %vm342, 0, %v350
        %352 = vst [vmem:[%s250 + $0x8] sm:$0xf] %v351
        %353 = vst [vmem:[%s250 + $0xc] sm:$0xf] 0
        %s354 = sand.u32 %s119, 1
        %s355 = scalar_lea.sflag [#allocation4], %s354
        %s356 = sand.u32 %s119, 1
        %s357 = smul.addr %s356, 16
        %s358 = scalar_lea.vmem [#allocation8], %s357
        // Predicated region
        $region49: #{tpu_custom_call.1} parent=35 // pred_check
          %p359 = pneg %p129
        $region50: #{tpu_custom_call.1} parent=35 // pred_check_branch
          %361 = sbr.rel (%p359) target = $region52
        $region51: #{tpu_custom_call.1} parent=35 // pred_region
          %363 = vsyncadd %s355, 0
          %s364 = smul.addr %s22, 4
          %s365 = smul.addr %s364, 4
          %s366 = scalar_lea.hbm %s4, %s365
          %s367 = sshll.u32 %s358, 4
          %s368 = int_to_ptr.vmem [resolvable:$true] %s367
          %s369 = sshll.u32 %s366, 4
          %s370 = int_to_ptr.hbm [resolvable:$true] %s369
          %375 = dma.vmem_to_hbm [thread:$0]  %s368, 256, %s370, %s355, 64, 64, 4
        $region52: #{tpu_custom_call.1} parent=35 // pred_fallthru
          _
      $region36: #{tpu_custom_call.1} parent=5 // pred_fallthru
        _
      %p376 = scmp.le.s32.totalorder 2, %s17
      // Predicated region
      $region53: #{tpu_custom_call.1} parent=5 // pred_check
        %p377 = pneg %p376
      $region54: #{tpu_custom_call.1} parent=5 // pred_check_branch
        %379 = sbr.rel (%p377) target = $region56
      $region55: #{tpu_custom_call.1} parent=5 // pred_region
        %s380 = ssub.s32 %s17, 2
        // Predicated region
        $region57: #{tpu_custom_call.1} parent=55 // pred_check
          %p381 = pneg %p135
        $region58: #{tpu_custom_call.1} parent=55 // pred_check_branch
          %383 = sbr.rel (%p381) target = $region60
        $region59: #{tpu_custom_call.1} parent=55 // pred_region
          %s384 = sand.u32 %s120, 1
          %s385 = scalar_lea.sflag [#allocation4], %s384
          %s386 = sand.u32 %s120, 1
          %s387 = smul.addr %s386, 16
          %s388 = scalar_lea.vmem [#allocation8], %s387
          %390 = dma.done %s385, 256
        $region60: #{tpu_custom_call.1} parent=55 // pred_fallthru
          _
      $region56: #{tpu_custom_call.1} parent=5 // pred_fallthru
        _
    $region6: #{tpu_custom_call.1} parent=1 // loop_footer
      %s21 = sadd.s32 1, %s17
    $region7: #{tpu_custom_call.1} parent=1 // loop_footer_branch
      %16 = sbr.rel target = $region3
    $region8: #{tpu_custom_call.1} parent=1 // loop_exit
      _
    %391 = vsyncpa [#allocation3], 1
    %s392 = scalar_lea.sflag [#allocation3], 1
    %393 = vsyncpa %s392, 1
    %394 = vsyncpa [#allocation6], 1
    %395 = vsyncpa [#allocation4], 1
    %s396 = scalar_lea.sflag [#allocation4], 1
    %397 = vsyncpa %s396, 1

</llo_original>
